<compile_context>
chip_gen: v6e
topology: v6e:2x2x1
jax: 0.10.0
libtpu: 0.0.40
codegen_flags: <defaults>
</compile_context>

<pallas_src>
import functools

import jax
import jax.numpy as jnp
from jax.experimental import pallas as pl
from jax.experimental.pallas import tpu as pltpu


# ---------------------------------------------------------------------------
# Kernel: the whole Conv_Block forward for bN batch elements per grid step.
# ---------------------------------------------------------------------------
def _conv_block_kernel(x_ref, m1_ref, b1_ref, m2_ref, b2_ref, o_ref):
    # x_ref : (bN, H, 3*Cin*W)   dy-stacked, H-halo already applied (wrapper)
    # m1_ref: (3*Cin*W, W*Cmid)  banded conv1 weights, dy folded into K
    # b1_ref: (1, W*Cmid)        conv1 bias tiled per output pixel (f32)
    # m2_ref: (3*W*Cmid, W*Cout) banded conv2 weights, dy folded into K
    # b2_ref: (1, W*Cout)        conv2 bias tiled per output pixel (f32)
    # o_ref : (bN, H, W*Cout)    lane-dense packed output
    bN, H, K1 = x_ref.shape
    WCmid = b1_ref.shape[-1]
    WCout = o_ref.shape[-1]
    f32 = jnp.float32

    # ---- conv1 + bias + ReLU: ONE MXU matmul, M = bN*H, K = 3*Cin*W --------
    lhs1 = x_ref[...].reshape(bN * H, K1)
    h1 = jnp.dot(lhs1, m1_ref[...], preferred_element_type=f32)
    h1 = jnp.maximum(h1 + b1_ref[...], 0.0)                  # (bN*H, W*Cmid) f32

    # ---- conv2: intermediate stays on-chip.  Per-batch-element H halo ------
    # (single zero-row pad + 3 static row windows stacked along lanes -> deep K)
    h1 = h1.reshape(bN, H, WCmid).astype(m2_ref.dtype)
    zrow = jnp.zeros((bN, 1, WCmid), m2_ref.dtype)
    hpad = jnp.concatenate([zrow, h1, zrow], axis=1)         # (bN, H+2, W*Cmid)
    lhs2 = jnp.concatenate([hpad[:, dy:dy + H, :] for dy in range(3)],
                           axis=-1).reshape(bN * H, 3 * WCmid)

    # ---- conv2 + bias + ReLU: ONE MXU matmul, M = bN*H, K = 3*W*Cmid -------
    y = jnp.dot(lhs2, m2_ref[...], preferred_element_type=f32)
    y = jnp.maximum(y + b2_ref[...], 0.0)                    # (bN*H, W*Cout) f32

    # Unmasked lane-dense store when W*Cout is a multiple of 128 (128 here).
    o_ref[...] = y.reshape(bN, H, WCout).astype(o_ref.dtype)


# ---------------------------------------------------------------------------
# Wrapper-side (trace-time) weight banding and tiling decisions.
# ---------------------------------------------------------------------------
def _banded_conv3x3_weights(w_hwio, W, planar_in):
    """3x3 HWIO weights -> banded matrix (3*Cin*W, W*Cout), dy folded into K.

    Row index:  dy*Cin*W + ci*W + r     (planar_in)
                dy*Cin*W + r*Cin + ci   (interleaved)
    Col index:  w*Cout + co; entry = w[dy, r-w+1, ci, co] (zero outside band),
    which absorbs the padding=1 zero padding along the W axis.
    """
    _, _, Cin, Cout = w_hwio.shape
    r = jnp.arange(W)[:, None]          # input pixel index
    c = jnp.arange(W)[None, :]          # output pixel index
    dx = r - c + 1                      # (W, W)
    valid = (dx >= 0) & (dx < 3)
    dx_c = jnp.clip(dx, 0, 2)
    blk = w_hwio[:, dx_c, :, :]         # (3, W, W, Cin, Cout): [dy, r, c, ci, co]
    blk = blk * valid[None, :, :, None, None].astype(w_hwio.dtype)
    if planar_in:
        m = blk.transpose(0, 3, 1, 2, 4)     # (3, Cin, r, c, Cout)
    else:
        m = blk.transpose(0, 1, 3, 2, 4)     # (3, r, Cin, c, Cout)
    return m.reshape(3 * Cin * W, W * Cout)


def _choose_block_batch(N, H, target_m=256):
    """Largest divisor of N with bN*H <= target_m, keeping >= 2 grid steps if N >= 2."""
    cap = max(1, N // 2) if N >= 2 else 1   # >= 2 steps -> both v7x TCs busy
    target_bn = max(1, target_m // H)       # M ~ 256 fills v6e/v7x MXU rows
    best = 1
    for d in range(1, N + 1):
        if N % d == 0 and d <= target_bn and d <= cap:
            best = d
    return best


@functools.partial(jax.jit, static_argnames=("compute_dtype",))
def conv_block_forward(x_nchw, w1_hwio, b1, w2_hwio, b2,
                       compute_dtype=jnp.float32):
    """Conv_Block.forward with default args (stride=1, padding=1, groups=1,
    bias=True, ReLU, no batch norm, no dropout).

    compute_dtype=jnp.bfloat16 halves operand DMA/VMEM and uses the MXU bf16
    rate (f32 accumulation / bias / ReLU are kept either way).
    """
    N, Cin, H, W = x_nchw.shape
    assert w1_hwio.shape[:2] == (3, 3) and w2_hwio.shape[:2] == (3, 3), \
        "Conv_Block kernel assumes kernel_size=3"
    assert w1_hwio.shape[2] == Cin
    Cmid = w1_hwio.shape[-1]
    Cout = w2_hwio.shape[-1]
    assert w2_hwio.shape[2] == Cmid

    # ---- layout plumbing on the XLA side (tiny data, hidden by pipeline) ----
    # lane-dense planar pack: (N, Cin, H, W) -> (N, H, Cin*W)
    x_pl = jnp.transpose(x_nchw, (0, 2, 1, 3)).reshape(N, H, Cin * W)
    # H halo + dy stacking so conv1 needs NO in-kernel slicing: (N, H, 3*Cin*W)
    x_padh = jnp.pad(x_pl, ((0, 0), (1, 1), (0, 0)))
    x_stk = jnp.concatenate([x_padh[:, dy:dy + H, :] for dy in range(3)],
                            axis=-1).astype(compute_dtype)

    # banded weights, dy folded into K (W-direction padding absorbed in band)
    m1 = _banded_conv3x3_weights(w1_hwio, W, planar_in=True).astype(compute_dtype)
    m2 = _banded_conv3x3_weights(w2_hwio, W, planar_in=False).astype(compute_dtype)
    b1r = jnp.tile(b1.astype(jnp.float32), W)[None, :]        # (1, W*Cmid)
    b2r = jnp.tile(b2.astype(jnp.float32), W)[None, :]        # (1, W*Cout)

    # ---- batch blocking: M = bN*H per grid step --------------------------------
    bN = _choose_block_batch(N, H, target_m=256)
    grid = (N // bN,)

    # Cost hint for the XLA scheduler + an explicit (generous) VMEM budget.
    flops = 2 * N * H * (m1.shape[0] * m1.shape[1] + m2.shape[0] * m2.shape[1])
    bytes_accessed = (x_stk.size * x_stk.dtype.itemsize
                      + (m1.size + m2.size) * m1.dtype.itemsize
                      + (b1r.size + b2r.size) * 4
                      + N * H * W * Cout * x_nchw.dtype.itemsize)
    block_bytes = (bN * H * (3 * Cin * W) * x_stk.dtype.itemsize
                   + bN * H * W * Cout * x_nchw.dtype.itemsize)
    weight_bytes = (m1.size + m2.size) * m1.dtype.itemsize + (b1r.size + b2r.size) * 4
    vmem_limit = int(min(64 * 2**20,
                         max(8 * 2**20, 6 * (2 * block_bytes + 2 * weight_bytes))))

    y_packed = pl.pallas_call(
        _conv_block_kernel,
        out_shape=jax.ShapeDtypeStruct((N, H, W * Cout), x_nchw.dtype),
        grid=grid,
        in_specs=[
            pl.BlockSpec((bN, H, 3 * Cin * W), lambda n: (n, 0, 0)),
            # grid-invariant weights / biases: constant index_map, fetched once
            pl.BlockSpec((3 * Cin * W, W * Cmid), lambda n: (0, 0)),
            pl.BlockSpec((1, W * Cmid), lambda n: (0, 0)),
            pl.BlockSpec((3 * W * Cmid, W * Cout), lambda n: (0, 0)),
            pl.BlockSpec((1, W * Cout), lambda n: (0, 0)),
        ],
        out_specs=pl.BlockSpec((bN, H, W * Cout), lambda n: (n, 0, 0)),
        compiler_params=pltpu.CompilerParams(
            dimension_semantics=("parallel",),
            vmem_limit_bytes=vmem_limit),
        cost_estimate=pl.CostEstimate(flops=int(flops), transcendentals=0,
                                      bytes_accessed=int(bytes_accessed)),
    )(x_stk, m1, b1r, m2, b2r)

    # Unpack lane-dense (N, H, W*Cout) back to PyTorch's NCHW.
    return jnp.transpose(y_packed.reshape(N, H, W, Cout), (0, 3, 1, 2))


def _torch_style_conv_init(key, cin, cout):
    """Deterministic init mimicking PyTorch Conv2d default (uniform +-1/sqrt(fan_in))."""
    kw, kb = jax.random.split(key)
    fan_in = cin * 3 * 3
    bound = 1.0 / jnp.sqrt(fan_in)
    w = jax.random.uniform(kw, (3, 3, cin, cout), jnp.float32, -bound, bound)
    b = jax.random.uniform(kb, (cout,), jnp.float32, -bound, bound)
    return w, b


if __name__ == "__main__":
    key = jax.random.PRNGKey(0)
    kx, k1, k2 = jax.random.split(key, 3)

    # Conv_Block(conv_dim=2, in_channels=4, out_channels=8,
    #            intermediate_channel_multiplier=1) on a (4, 4, 16, 16) input
    # (N=4 so the batch-blocked grid actually packs 2 images per step).
    N, Cin, H, W = 4, 4, 16, 16
    Cout = 8
    Cmid = Cout * 1

    x = jax.random.normal(kx, (N, Cin, H, W), jnp.float32)
    w1, b1 = _torch_style_conv_init(k1, Cin, Cmid)
    w2, b2 = _torch_style_conv_init(k2, Cmid, Cout)

    y = conv_block_forward(x, w1, b1, w2, b2)
    jax.block_until_ready(y)

    # Reference check in plain JAX (lax conv, NCHW/OIHW like PyTorch).
    def ref_conv_relu(x_nchw, w_hwio, b):
        w_oihw = jnp.transpose(w_hwio, (3, 2, 0, 1))
        out = jax.lax.conv_general_dilated(
            x_nchw, w_oihw, window_strides=(1, 1), padding=((1, 1), (1, 1)),
            dimension_numbers=("NCHW", "OIHW", "NCHW"),
            precision=jax.lax.Precision.HIGHEST)
        return jnp.maximum(out + b[None, :, None, None], 0.0)

    y_ref = ref_conv_relu(ref_conv_relu(x, w1, b1), w2, b2)
    assert y.shape == (N, Cout, H, W)
    assert jnp.allclose(y, y_ref, atol=1e-4, rtol=1e-4), "mismatch vs reference"

    print("KERNEL_OK")
</pallas_src>

<mosaic_0001>
module attributes {stable_mosaic.version = 11 : i64} {
  func.func @_conv_block_kernel(%arg0: i32, %arg1: memref<2x16x192xf32, #tpu.memory_space<vmem>>, %arg2: memref<192x128xf32, #tpu.memory_space<vmem>>, %arg3: memref<1x128xf32, #tpu.memory_space<vmem>>, %arg4: memref<384x128xf32, #tpu.memory_space<vmem>>, %arg5: memref<1x128xf32, #tpu.memory_space<vmem>>, %arg6: memref<2x16x128xf32, #tpu.memory_space<vmem>>) attributes {dimension_semantics = [#tpu.dimension_semantics<parallel>], iteration_bounds = array<i64: 2>, scalar_prefetch = 0 : i64, scratch_operands = 0 : i64, tpu.core_type = #tpu.core_type<tc>, window_params = [{transform_indices = @transform_0, window_bounds = array<i64: 2, 16, 192>}, {pipeline_mode = #tpu.pipeline_mode<synchronous>, transform_indices = @transform_1, window_bounds = array<i64: 192, 128>}, {pipeline_mode = #tpu.pipeline_mode<synchronous>, transform_indices = @transform_2, window_bounds = array<i64: 1, 128>}, {pipeline_mode = #tpu.pipeline_mode<synchronous>, transform_indices = @transform_3, window_bounds = array<i64: 384, 128>}, {pipeline_mode = #tpu.pipeline_mode<synchronous>, transform_indices = @transform_4, window_bounds = array<i64: 1, 128>}, {transform_indices = @transform_5, window_bounds = array<i64: 2, 16, 128>}]} {
    %c0 = arith.constant 0 : index
    %c0_0 = arith.constant 0 : index
    %c0_1 = arith.constant 0 : index
    %0 = vector.load %arg1[%c0, %c0_0, %c0_1] : memref<2x16x192xf32, #tpu.memory_space<vmem>>, vector<2x16x192xf32>
    %1 = vector.shape_cast %0 : vector<2x16x192xf32> to vector<32x192xf32>
    %c0_2 = arith.constant 0 : index
    %c0_3 = arith.constant 0 : index
    %2 = vector.load %arg2[%c0_2, %c0_3] : memref<192x128xf32, #tpu.memory_space<vmem>>, vector<192x128xf32>
    %cst = arith.constant dense<0.000000e+00> : vector<32x128xf32>
    %3 = tpu.matmul %1, %2, %cst {dimension_numbers = #tpu.dot_dimension_numbers<[1], [0], [0], [1], [0, 0, 1, 1], [], []>} : vector<32x192xf32>, vector<192x128xf32>, vector<32x128xf32> -> vector<32x128xf32>
    %c0_4 = arith.constant 0 : index
    %c0_5 = arith.constant 0 : index
    %4 = vector.load %arg3[%c0_4, %c0_5] : memref<1x128xf32, #tpu.memory_space<vmem>>, vector<1x128xf32>
    %5 = vector.broadcast %4 : vector<1x128xf32> to vector<32x128xf32>
    %6 = arith.addf %3, %5 : vector<32x128xf32>
    %cst_6 = arith.constant 0.000000e+00 : f32
    %7 = vector.broadcast %cst_6 : f32 to vector<32x128xf32>
    %8 = arith.maximumf %6, %7 : vector<32x128xf32>
    %9 = vector.shape_cast %8 : vector<32x128xf32> to vector<2x16x128xf32>
    %cst_7 = arith.constant 0.000000e+00 : f32
    %10 = vector.broadcast %cst_7 : f32 to vector<2x1x128xf32>
    %11 = tpu.concatenate %10, %9, %10 in 1 : vector<2x1x128xf32>, vector<2x16x128xf32>, vector<2x1x128xf32> -> vector<2x18x128xf32>
    %12 = vector.extract_strided_slice %11 {offsets = [0, 0, 0], sizes = [2, 16, 128], strides = [1, 1, 1]} : vector<2x18x128xf32> to vector<2x16x128xf32>
    %13 = vector.extract_strided_slice %11 {offsets = [0, 1, 0], sizes = [2, 16, 128], strides = [1, 1, 1]} : vector<2x18x128xf32> to vector<2x16x128xf32>
    %14 = vector.extract_strided_slice %11 {offsets = [0, 2, 0], sizes = [2, 16, 128], strides = [1, 1, 1]} : vector<2x18x128xf32> to vector<2x16x128xf32>
    %15 = tpu.concatenate %12, %13, %14 in 2 : vector<2x16x128xf32>, vector<2x16x128xf32>, vector<2x16x128xf32> -> vector<2x16x384xf32>
    %16 = vector.shape_cast %15 : vector<2x16x384xf32> to vector<32x384xf32>
    %c0_8 = arith.constant 0 : index
    %c0_9 = arith.constant 0 : index
    %17 = vector.load %arg4[%c0_8, %c0_9] : memref<384x128xf32, #tpu.memory_space<vmem>>, vector<384x128xf32>
    %cst_10 = arith.constant dense<0.000000e+00> : vector<32x128xf32>
    %18 = tpu.matmul %16, %17, %cst_10 {dimension_numbers = #tpu.dot_dimension_numbers<[1], [0], [0], [1], [0, 0, 1, 1], [], []>} : vector<32x384xf32>, vector<384x128xf32>, vector<32x128xf32> -> vector<32x128xf32>
    %c0_11 = arith.constant 0 : index
    %c0_12 = arith.constant 0 : index
    %19 = vector.load %arg5[%c0_11, %c0_12] : memref<1x128xf32, #tpu.memory_space<vmem>>, vector<1x128xf32>
    %20 = vector.broadcast %19 : vector<1x128xf32> to vector<32x128xf32>
    %21 = arith.addf %18, %20 : vector<32x128xf32>
    %cst_13 = arith.constant 0.000000e+00 : f32
    %22 = vector.broadcast %cst_13 : f32 to vector<32x128xf32>
    %23 = arith.maximumf %21, %22 : vector<32x128xf32>
    %24 = vector.shape_cast %23 : vector<32x128xf32> to vector<2x16x128xf32>
    %c0_14 = arith.constant 0 : index
    %c0_15 = arith.constant 0 : index
    %c0_16 = arith.constant 0 : index
    %25 = vector.load %arg6[%c0_14, %c0_15, %c0_16] : memref<2x16x128xf32, #tpu.memory_space<vmem>>, vector<2x16x128xf32>
    tpu.vector_store %arg6[%c0_14, %c0_15, %c0_16], %24 {strides = array<i32>} : memref<2x16x128xf32, #tpu.memory_space<vmem>>, vector<2x16x128xf32>,
    return
  }
  func.func @transform_0(%arg0: i32) -> (i32, i32, i32) {
    %c0_i32 = arith.constant 0 : i32
    %c0_i32_0 = arith.constant 0 : i32
    %c0_i32_1 = arith.constant 0 : i32
    return %arg0, %c0_i32, %c0_i32_0 : i32, i32, i32
  }
  func.func @transform_1(%arg0: i32) -> (i32, i32) {
    %c0_i32 = arith.constant 0 : i32
    %c0_i32_0 = arith.constant 0 : i32
    %c0_i32_1 = arith.constant 0 : i32
    return %c0_i32, %c0_i32_0 : i32, i32
  }
  func.func @transform_2(%arg0: i32) -> (i32, i32) {
    %c0_i32 = arith.constant 0 : i32
    %c0_i32_0 = arith.constant 0 : i32
    %c0_i32_1 = arith.constant 0 : i32
    return %c0_i32, %c0_i32_0 : i32, i32
  }
  func.func @transform_3(%arg0: i32) -> (i32, i32) {
    %c0_i32 = arith.constant 0 : i32
    %c0_i32_0 = arith.constant 0 : i32
    %c0_i32_1 = arith.constant 0 : i32
    return %c0_i32, %c0_i32_0 : i32, i32
  }
  func.func @transform_4(%arg0: i32) -> (i32, i32) {
    %c0_i32 = arith.constant 0 : i32
    %c0_i32_0 = arith.constant 0 : i32
    %c0_i32_1 = arith.constant 0 : i32
    return %c0_i32, %c0_i32_0 : i32, i32
  }
  func.func @transform_5(%arg0: i32) -> (i32, i32, i32) {
    %c0_i32 = arith.constant 0 : i32
    %c0_i32_0 = arith.constant 0 : i32
    %c0_i32_1 = arith.constant 0 : i32
    return %arg0, %c0_i32, %c0_i32_0 : i32, i32, i32
  }
}

</mosaic_0001>

<llo_original>
// kernel: tile.13
$region0: #{tile.13}
  #allocation0 [shape = 's32[1]{0}', space=sflag, size = 0x4, scoped, tag = 'scoped memory for tile.13']
  %s0 = inlined_call_operand.vmem [shape: f32[8], index: 0, kind: input, shape index: {}]
  %s1 = inlined_call_operand.vmem [shape: f32[16,8], index: 1, kind: output, shape index: {}]
  // Predicated region
  $region2: #{tile.13} parent=0 // pred_check
    _
  $region3: #{tile.13} parent=0 // pred_check_branch
    %3 = sbr.rel (0) target = $region5
  $region4: #{tile.13} parent=0 // pred_region
    _
  $region5: #{tile.13} parent=0 // pred_fallthru
    _
  %v4 = vld [vmem:[%s0] ss:$0 sm:$0xff]
  %5 = vst [vmem:[%s1] sm:$0xff] %v4
  %s6 = scalar_lea.vmem %s1, 8
  %7 = vst [vmem:[%s6] sm:$0xff] %v4

// kernel: tile.14
$region0: #{tile.14}
  %s0 = inlined_call_operand.vmem [shape: f32[16,8], index: 0, kind: input, shape index: {}]
  %s1 = inlined_call_operand.vmem [shape: f32[1,128], index: 1, kind: output, shape index: {}]
  $region1: #{tile.14} parent=0
    #allocation0 [shape = 'u8[4096]{0}', space=vmem, size = 0x1000, scoped, tag = 'scoped mem for output reshape']
    %v2 = vld [vmem:[%s0] sm:$0x1]
    %vm3 = vcmask 64512
    %4 = vst.msk [vmem:[#allocation0] sm:$0x1] %vm3, %v2
    %s5 = scalar_lea.vmem %s0, 15
    %v6 = vld [vmem:[%s5] sm:$0x1]
    %7 = vrot.lane.b32.xlu0 %v6, 120
    %v8 = vpop.permute.xlu0 %7
    %vm9 = vcmask 1048512
    %10 = vst.msk [vmem:[#allocation0] sm:$0x1] %vm9, %v8
    %s11 = scalar_lea.vmem %s0, 14
    %v12 = vld [vmem:[%s11] sm:$0x1]
    %13 = vrot.lane.b32.xlu0 %v12, 112
    %v14 = vpop.permute.xlu0 %13
    %vm15 = vcmask 982912
    %16 = vst.msk [vmem:[#allocation0] sm:$0x1] %vm15, %v14
    %s17 = scalar_lea.vmem %s0, 13
    %v18 = vld [vmem:[%s17] sm:$0x1]
    %19 = vrot.lane.b32.xlu0 %v18, 104
    %v20 = vpop.permute.xlu0 %19
    %vm21 = vcmask 917312
    %22 = vst.msk [vmem:[#allocation0] sm:$0x1] %vm21, %v20
    %s23 = scalar_lea.vmem %s0, 12
    %v24 = vld [vmem:[%s23] sm:$0x1]
    %25 = vrot.lane.b32.xlu0 %v24, 96
    %v26 = vpop.permute.xlu0 %25
    %vm27 = vcmask 851712
    %28 = vst.msk [vmem:[#allocation0] sm:$0x1] %vm27, %v26
    %s29 = scalar_lea.vmem %s0, 11
    %v30 = vld [vmem:[%s29] sm:$0x1]
    %31 = vrot.lane.b32.xlu0 %v30, 88
    %v32 = vpop.permute.xlu0 %31
    %vm33 = vcmask 786112
    %34 = vst.msk [vmem:[#allocation0] sm:$0x1] %vm33, %v32
    %s35 = scalar_lea.vmem %s0, 10
    %v36 = vld [vmem:[%s35] sm:$0x1]
    %37 = vrot.lane.b32.xlu0 %v36, 80
    %v38 = vpop.permute.xlu0 %37
    %vm39 = vcmask 720512
    %40 = vst.msk [vmem:[#allocation0] sm:$0x1] %vm39, %v38
    %s41 = scalar_lea.vmem %s0, 9
    %v42 = vld [vmem:[%s41] sm:$0x1]
    %43 = vrot.lane.b32.xlu0 %v42, 72
    %v44 = vpop.permute.xlu0 %43
    %vm45 = vcmask 654912
    %46 = vst.msk [vmem:[#allocation0] sm:$0x1] %vm45, %v44
    %s47 = scalar_lea.vmem %s0, 8
    %v48 = vld [vmem:[%s47] sm:$0x1]
    %49 = vrot.lane.b32.xlu0 %v48, 64
    %v50 = vpop.permute.xlu0 %49
    %vm51 = vcmask 589312
    %52 = vst.msk [vmem:[#allocation0] sm:$0x1] %vm51, %v50
    %s53 = scalar_lea.vmem %s0, 7
    %v54 = vld [vmem:[%s53] sm:$0x1]
    %55 = vrot.lane.b32.xlu0 %v54, 56
    %v56 = vpop.permute.xlu0 %55
    %vm57 = vcmask 523712
    %58 = vst.msk [vmem:[#allocation0] sm:$0x1] %vm57, %v56
    %s59 = scalar_lea.vmem %s0, 6
    %v60 = vld [vmem:[%s59] sm:$0x1]
    %61 = vrot.lane.b32.xlu0 %v60, 48
    %v62 = vpop.permute.xlu0 %61
    %vm63 = vcmask 458112
    %64 = vst.msk [vmem:[#allocation0] sm:$0x1] %vm63, %v62
    %s65 = scalar_lea.vmem %s0, 5
    %v66 = vld [vmem:[%s65] sm:$0x1]
    %67 = vrot.lane.b32.xlu0 %v66, 40
    %v68 = vpop.permute.xlu0 %67
    %vm69 = vcmask 392512
    %70 = vst.msk [vmem:[#allocation0] sm:$0x1] %vm69, %v68
    %s71 = scalar_lea.vmem %s0, 4
    %v72 = vld [vmem:[%s71] sm:$0x1]
    %73 = vrot.lane.b32.xlu0 %v72, 32
    %v74 = vpop.permute.xlu0 %73
    %vm75 = vcmask 326912
    %76 = vst.msk [vmem:[#allocation0] sm:$0x1] %vm75, %v74
    %s77 = scalar_lea.vmem %s0, 3
    %v78 = vld [vmem:[%s77] sm:$0x1]
    %79 = vrot.lane.b32.xlu0 %v78, 24
    %v80 = vpop.permute.xlu0 %79
    %vm81 = vcmask 261312
    %82 = vst.msk [vmem:[#allocation0] sm:$0x1] %vm81, %v80
    %s83 = scalar_lea.vmem %s0, 2
    %v84 = vld [vmem:[%s83] sm:$0x1]
    %85 = vrot.lane.b32.xlu0 %v84, 16
    %v86 = vpop.permute.xlu0 %85
    %vm87 = vcmask 195712
    %88 = vst.msk [vmem:[#allocation0] sm:$0x1] %vm87, %v86
    %s89 = scalar_lea.vmem %s0, 1
    %v90 = vld [vmem:[%s89] sm:$0x1]
    %91 = vrot.lane.b32.xlu0 %v90, 8
    %v92 = vpop.permute.xlu0 %91
    %vm93 = vcmask 130112
    %94 = vst.msk [vmem:[#allocation0] sm:$0x1] %vm93, %v92
    %s96 = sshll.u32 1, 1
    %s97 = ssub.s32 %s96, 1
    %v99 = vld [vmem:[#allocation0] sm:%s97]
    %s100 = sshll.u32 1, 1
    %s101 = ssub.s32 %s100, 1
    %102 = vst [vmem:[%s1] sm:%s101] %v99

// kernel: conv_block_forward.1
$region0: #{conv_block_forward.1}
  #allocation0 [shape = 'u32[]', space=smem, size = 0x4, offset = 0x4, fixed_abs, tag = 'smem constant byte address 0x4 - core index']
  #allocation1 [shape = 'u32[144,128]{1,0:T(1,128)}', space=vmem, size = 0x12000, scoped, tag = 'internal scratch']
  %s0 = inlined_call_operand.vmem [shape: f32[4,16,192], index: 0, kind: input, shape index: {}]
  %s1 = inlined_call_operand.vmem [shape: f32[192,128], index: 1, kind: input, shape index: {}]
  %s2 = inlined_call_operand.vmem [shape: f32[1,128], index: 2, kind: input, shape index: {}]
  %s3 = inlined_call_operand.vmem [shape: f32[384,128], index: 3, kind: input, shape index: {}]
  %s4 = inlined_call_operand.vmem [shape: f32[1,128], index: 4, kind: input, shape index: {}]
  %s5 = inlined_call_operand.vmem [shape: f32[4,16,128], index: 5, kind: output, shape index: {}]
  %s6 = sld [smem:[#allocation0]]
  $region53: #{conv_block_forward.1} parent=0
    _
  %s8 = ssub.s32 1, %s6
  %s9 = scalar_select 0, %s8, %s6
  loop: start=0, step=1, limit=4
  $region2: #{conv_block_forward.1} parent=0 // loop_pre_header
    _
  $region3: #{conv_block_forward.1} parent=0 // loop_header
    %s11 = sphi 0, %s15
    %p12 = scmp.ge.s32.totalorder %s11, 4
    %s21 = sphi 0, %s23
    %s24 = sphi 0, %s21
    %s25 = sphi 0, %s24
    %s41 = sphi 0, %s25
    %s45 = sphi 0, %s45
    %s47 = sphi 0, %s45
    %s48 = sphi 0, %s47
    %s62 = sphi 0, %s48
    %s66 = sphi 0, %s66
    %s68 = sphi 0, %s66
    %s69 = sphi 0, %s68
    %s83 = sphi 0, %s69
    %s87 = sphi 0, %s87
    %s89 = sphi 0, %s87
    %s90 = sphi 0, %s89
    %s104 = sphi 0, %s90
    %s108 = sphi 0, %s108
    %s110 = sphi 0, %s108
    %s111 = sphi 0, %s110
    %s125 = sphi 0, %s111
    %s131 = sphi 0, %s133
    %s134 = sphi 0, %s131
    %s135 = sphi 0, %s134
    %s151 = sphi 0, %s135
  $region4: #{conv_block_forward.1} parent=0 // loop_header_branch
    %14 = sbr.rel (%p12) target = $region8
  $region5: #{conv_block_forward.1} parent=0 // loop_body
    %s16 = ssub.s32 %s11, 1
    %s17 = ssub.s32 %s11, 2
    %s18 = sadd.s32 %s11, 1
    %s19 = ssub.s32 %s11, %s18
    %p20 = scmp.eq.s32.totalorder %s19, 0
    %s22 = sadd.s32 %s21, 1
    %s23 = scalar_select %p20, %s21, %s22
    %p26 = pneg %p20
    %p27 = scmp.eq.s32.totalorder %s11, 1
    %p28 = por %p26, %p27
    %p29 = scmp.ne.s32.totalorder %s21, %s24
    %p30 = scmp.eq.s32.totalorder %s11, 0
    %p31 = por %p29, %p30
    %p32 = scmp.ne.s32.totalorder %s21, %s24
    %p33 = scmp.eq.s32.totalorder %s16, 1
    %p34 = por %p32, %p33
    %p35 = scmp.ne.s32.totalorder %s24, %s25
    %p36 = scmp.eq.s32.totalorder %s16, 0
    %p37 = por %p35, %p36
    %p38 = scmp.ne.s32.totalorder %s24, %s25
    %p39 = scmp.eq.s32.totalorder %s17, 1
    %p40 = por %p38, %p39
    %p42 = scmp.ne.s32.totalorder %s25, %s41
    %p43 = scmp.eq.s32.totalorder %s17, 0
    %p44 = por %p42, %p43
    %s46 = sadd.s32 %s45, 1
    %p49 = scmp.eq.s32.totalorder %s11, 1
    %p50 = scmp.ne.s32.totalorder %s45, %s47
    %p51 = scmp.eq.s32.totalorder %s11, 0
    %p52 = por %p50, %p51
    %p53 = scmp.ne.s32.totalorder %s45, %s47
    %p54 = scmp.eq.s32.totalorder %s16, 1
    %p55 = por %p53, %p54
    %p56 = scmp.ne.s32.totalorder %s47, %s48
    %p57 = scmp.eq.s32.totalorder %s16, 0
    %p58 = por %p56, %p57
    %p59 = scmp.ne.s32.totalorder %s47, %s48
    %p60 = scmp.eq.s32.totalorder %s17, 1
    %p61 = por %p59, %p60
    %p63 = scmp.ne.s32.totalorder %s48, %s62
    %p64 = scmp.eq.s32.totalorder %s17, 0
    %p65 = por %p63, %p64
    %s67 = sadd.s32 %s66, 1
    %p70 = scmp.eq.s32.totalorder %s11, 1
    %p71 = scmp.ne.s32.totalorder %s66, %s68
    %p72 = scmp.eq.s32.totalorder %s11, 0
    %p73 = por %p71, %p72
    %p74 = scmp.ne.s32.totalorder %s66, %s68
    %p75 = scmp.eq.s32.totalorder %s16, 1
    %p76 = por %p74, %p75
    %p77 = scmp.ne.s32.totalorder %s68, %s69
    %p78 = scmp.eq.s32.totalorder %s16, 0
    %p79 = por %p77, %p78
    %p80 = scmp.ne.s32.totalorder %s68, %s69
    %p81 = scmp.eq.s32.totalorder %s17, 1
    %p82 = por %p80, %p81
    %p84 = scmp.ne.s32.totalorder %s69, %s83
    %p85 = scmp.eq.s32.totalorder %s17, 0
    %p86 = por %p84, %p85
    %s88 = sadd.s32 %s87, 1
    %p91 = scmp.eq.s32.totalorder %s11, 1
    %p92 = scmp.ne.s32.totalorder %s87, %s89
    %p93 = scmp.eq.s32.totalorder %s11, 0
    %p94 = por %p92, %p93
    %p95 = scmp.ne.s32.totalorder %s87, %s89
    %p96 = scmp.eq.s32.totalorder %s16, 1
    %p97 = por %p95, %p96
    %p98 = scmp.ne.s32.totalorder %s89, %s90
    %p99 = scmp.eq.s32.totalorder %s16, 0
    %p100 = por %p98, %p99
    %p101 = scmp.ne.s32.totalorder %s89, %s90
    %p102 = scmp.eq.s32.totalorder %s17, 1
    %p103 = por %p101, %p102
    %p105 = scmp.ne.s32.totalorder %s90, %s104
    %p106 = scmp.eq.s32.totalorder %s17, 0
    %p107 = por %p105, %p106
    %s109 = sadd.s32 %s108, 1
    %p112 = scmp.eq.s32.totalorder %s11, 1
    %p113 = scmp.ne.s32.totalorder %s108, %s110
    %p114 = scmp.eq.s32.totalorder %s11, 0
    %p115 = por %p113, %p114
    %p116 = scmp.ne.s32.totalorder %s108, %s110
    %p117 = scmp.eq.s32.totalorder %s16, 1
    %p118 = por %p116, %p117
    %p119 = scmp.ne.s32.totalorder %s110, %s111
    %p120 = scmp.eq.s32.totalorder %s16, 0
    %p121 = por %p119, %p120
    %p122 = scmp.ne.s32.totalorder %s110, %s111
    %p123 = scmp.eq.s32.totalorder %s17, 1
    %p124 = por %p122, %p123
    %p126 = scmp.ne.s32.totalorder %s111, %s125
    %p127 = scmp.eq.s32.totalorder %s17, 0
    %p128 = por %p126, %p127
    %s129 = ssub.s32 %s11, %s18
    %p130 = scmp.eq.s32.totalorder %s129, 0
    %s132 = sadd.s32 %s131, 1
    %s133 = scalar_select %p130, %s131, %s132
    %p136 = pneg %p130
    %p137 = scmp.eq.s32.totalorder %s11, 1
    %p138 = por %p136, %p137
    %p139 = scmp.ne.s32.totalorder %s131, %s134
    %p140 = scmp.eq.s32.totalorder %s11, 0
    %p141 = por %p139, %p140
    %p142 = scmp.ne.s32.totalorder %s131, %s134
    %p143 = scmp.eq.s32.totalorder %s16, 1
    %p144 = por %p142, %p143
    %p145 = scmp.ne.s32.totalorder %s134, %s135
    %p146 = scmp.eq.s32.totalorder %s16, 0
    %p147 = por %p145, %p146
    %p148 = scmp.ne.s32.totalorder %s134, %s135
    %p149 = scmp.eq.s32.totalorder %s17, 1
    %p150 = por %p148, %p149
    %p152 = scmp.ne.s32.totalorder %s135, %s151
    %p153 = scmp.eq.s32.totalorder %s17, 0
    %p154 = por %p152, %p153
    %p155 = scmp.le.s32.totalorder 1, %s11
    %p156 = scmp.lt.s32.totalorder %s11, 3
    %p157 = pnand %p155, %p156
    %p158 = pneg %p157
    // Predicated region
    $region9: #{conv_block_forward.1} parent=5 // pred_check
      _
    $region10: #{conv_block_forward.1} parent=5 // pred_check_branch
      %160 = sbr.rel (%p157) target = $region12
    $region11: #{conv_block_forward.1} parent=5 // pred_region
      %s161 = ssub.s32 %s11, 1
      // Predicated region
      $region13: #{conv_block_forward.1} parent=11 // pred_check
        %p162 = pneg %p58
      $region14: #{conv_block_forward.1} parent=11 // pred_check_branch
        %164 = sbr.rel (%p162) target = $region16
      $region15: #{conv_block_forward.1} parent=11 // pred_region
        _
      $region16: #{conv_block_forward.1} parent=11 // pred_fallthru
        _
      // Predicated region
      $region17: #{conv_block_forward.1} parent=11 // pred_check
        %p165 = pneg %p79
      $region18: #{conv_block_forward.1} parent=11 // pred_check_branch
        %167 = sbr.rel (%p165) target = $region20
      $region19: #{conv_block_forward.1} parent=11 // pred_region
        _
      $region20: #{conv_block_forward.1} parent=11 // pred_fallthru
        _
      // Predicated region
      $region21: #{conv_block_forward.1} parent=11 // pred_check
        %p168 = pneg %p100
      $region22: #{conv_block_forward.1} parent=11 // pred_check_branch
        %170 = sbr.rel (%p168) target = $region24
      $region23: #{conv_block_forward.1} parent=11 // pred_region
        _
      $region24: #{conv_block_forward.1} parent=11 // pred_fallthru
        _
      // Predicated region
      $region25: #{conv_block_forward.1} parent=11 // pred_check
        %p171 = pneg %p121
      $region26: #{conv_block_forward.1} parent=11 // pred_check_branch
        %173 = sbr.rel (%p171) target = $region28
      $region27: #{conv_block_forward.1} parent=11 // pred_region
        _
      $region28: #{conv_block_forward.1} parent=11 // pred_fallthru
        _
    $region12: #{conv_block_forward.1} parent=5 // pred_fallthru
      _
    %p174 = scmp.lt.s32.totalorder %s11, 2
    // Predicated region
    $region29: #{conv_block_forward.1} parent=5 // pred_check
      %p175 = pneg %p174
    $region30: #{conv_block_forward.1} parent=5 // pred_check_branch
      %177 = sbr.rel (%p175) target = $region32
    $region31: #{conv_block_forward.1} parent=5 // pred_region
      // Predicated region
      $region33: #{conv_block_forward.1} parent=31 // pred_check
        %p178 = pneg %p31
      $region34: #{conv_block_forward.1} parent=31 // pred_check_branch
        %180 = sbr.rel (%p178) target = $region36
      $region35: #{conv_block_forward.1} parent=31 // pred_region
        %s181 = smul.u32 2, %s11
        %p182 = scmp.lt.s32.totalorder %s181, 3
        %s183 = scalar_select %p182, %s181, 3
        %s184 = smul.addr %s183, 4
        %s185 = smul.addr %s184, 8
        %s186 = scalar_lea.vmem %s0, %s185
        %s187 = smul.u32 2, %s11
      $region36: #{conv_block_forward.1} parent=31 // pred_fallthru
        _
    $region32: #{conv_block_forward.1} parent=5 // pred_fallthru
      _
    %p188 = scmp.le.s32.totalorder 1, %s11
    %p189 = scmp.lt.s32.totalorder %s11, 3
    %p190 = pnand %p188, %p189
    %p191 = pneg %p190
    // Predicated region
    $region37: #{conv_block_forward.1} parent=5 // pred_check
      _
    $region38: #{conv_block_forward.1} parent=5 // pred_check_branch
      %193 = sbr.rel (%p190) target = $region40
    $region39: #{conv_block_forward.1} parent=5 // pred_region
      %s194 = ssub.s32 %s11, 1
      %s195 = smul.u32 2, %s16
      %p196 = scmp.lt.s32.totalorder %s195, 3
      %s197 = scalar_select %p196, %s195, 3
      %s198 = smul.addr %s197, 4
      %s199 = smul.addr %s198, 8
      %s200 = scalar_lea.vmem %s0, %s199
      %p201 = pneg %p37
      %p202 = pneg %p34
      %p203 = pneg %p58
      %p204 = pneg %p55
      %p205 = pneg %p79
      %p206 = pneg %p76
      %p207 = pneg %p100
      %p208 = pneg %p97
      %p209 = pneg %p121
      %p210 = pneg %p118
      %p211 = pneg %p147
      %p212 = pneg %p144
      %s213 = smul.u32 2, %s16
      %p214 = scmp.lt.s32.totalorder %s213, 3
      %s215 = scalar_select %p214, %s213, 3
      %s216 = smul.addr %s215, 2
      %s217 = smul.addr %s216, 8
      %s218 = scalar_lea.vmem %s5, %s217
      %s219 = smul.u32 2, %s16
      %p220 = scmp.lt.s32.totalorder %s219, 3
      %s221 = scalar_select %p220, %s219, 3
      %s222 = smul.addr %s221, 4
      %s223 = smul.addr %s222, 8
      %s224 = scalar_lea.vmem %s0, %s223
      %s225 = smul.u32 2, %s16
      %s226 = smul.u32 2, %s16
      %p227 = scmp.lt.s32.totalorder %s226, 3
      %s228 = scalar_select %p227, %s226, 3
      %s229 = smul.addr %s228, 2
      %s230 = smul.addr %s229, 8
      %s231 = scalar_lea.vmem %s5, %s230
      %s232 = smul.u32 2, %s16
      %v233 = vld [vmem:[%s224] sm:$0xff]
      %v234 = vld [vmem:[%s224 + $0x8] sm:$0xff]
      %v235 = vld [vmem:[%s224 + $0x10] sm:$0xff]
      %v236 = vld [vmem:[%s224 + $0x18] sm:$0xff]
      %v237 = vld [vmem:[%s224 + $0x20] sm:$0xff]
      %v238 = vld [vmem:[%s224 + $0x28] sm:$0xff]
      %v239 = vld [vmem:[%s224 + $0x30] sm:$0xff]
      %v240 = vld [vmem:[%s224 + $0x38] sm:$0xff]
      %v241 = vld [vmem:[%s1] sm:$0xff]
      %v242 = vld [vmem:[%s1 + $0x8] sm:$0xff]
      %v243 = vld [vmem:[%s1 + $0x10] sm:$0xff]
      %v244 = vld [vmem:[%s1 + $0x18] sm:$0xff]
      %v245 = vld [vmem:[%s1 + $0x20] sm:$0xff]
      %v246 = vld [vmem:[%s1 + $0x28] sm:$0xff]
      %v247 = vld [vmem:[%s1 + $0x30] sm:$0xff]
      %v248 = vld [vmem:[%s1 + $0x38] sm:$0xff]
      %v249 = vld [vmem:[%s1 + $0x40] sm:$0xff]
      %v250 = vld [vmem:[%s1 + $0x48] sm:$0xff]
      %v251 = vld [vmem:[%s1 + $0x50] sm:$0xff]
      %v252 = vld [vmem:[%s1 + $0x58] sm:$0xff]
      %v253 = vld [vmem:[%s1 + $0x60] sm:$0xff]
      %v254 = vld [vmem:[%s1 + $0x68] sm:$0xff]
      %v255 = vld [vmem:[%s1 + $0x70] sm:$0xff]
      %v256 = vld [vmem:[%s1 + $0x78] sm:$0xff]
      %v257 = vld [vmem:[%s1 + $0x80] sm:$0xff]
      %v258 = vld [vmem:[%s1 + $0x88] sm:$0xff]
      %v259 = vld [vmem:[%s1 + $0x90] sm:$0xff]
      %v260 = vld [vmem:[%s1 + $0x98] sm:$0xff]
      %v261 = vld [vmem:[%s1 + $0xa0] sm:$0xff]
      %v262 = vld [vmem:[%s1 + $0xa8] sm:$0xff]
      %v263 = vld [vmem:[%s1 + $0xb0] sm:$0xff]
      %v264 = vld [vmem:[%s1 + $0xb8] sm:$0xff]
      %v265 = vld [vmem:[%s2] sm:$0x1]
      %v267 = vlaneseq
      %v268 = vshrl.u32 %v267, 7
      %v269 = vsub.s32 0, %v268
      %v270 = vrot.slane %v265, %v269
      %vm272 = vcmask 523264
      %v274 = vsel %vm272, %v234, 0
      %v277 = vsel %vm272, %v236, 0
      %v280 = vsel %vm272, %v238, 0
      %v283 = vsel %vm272, %v240, 0
      %285 = vmatprep.subr.mxu0 0.0
      %286 = vmatpush1.msra.mxu0 %v256
      %287 = vmatprep.subr.mxu0 0.0
      %288 = vmatpush1.msra.mxu0 %v255
      %289 = vmatprep.subr.mxu0 0.0
      %290 = vmatpush1.msra.mxu0 %v254
      %291 = vmatprep.subr.mxu0 0.0
      %292 = vmatpush1.msra.mxu0 %v253
      %293 = vmatprep.subr.mxu0 0.0
      %294 = vmatpush1.msra.mxu0 %v252
      %295 = vmatprep.subr.mxu0 0.0
      %296 = vmatpush1.msra.mxu0 %v251
      %297 = vmatprep.subr.mxu0 0.0
      %298 = vmatpush1.msra.mxu0 %v250
      %299 = vmatprep.subr.mxu0 0.0
      %300 = vmatpush1.msra.mxu0 %v249
      %301 = vmatprep.subr.mxu0 0.0
      %302 = vmatpush1.msra.mxu0 %v248
      %303 = vmatprep.subr.mxu0 0.0
      %304 = vmatpush1.msra.mxu0 %v247
      %305 = vmatprep.subr.mxu0 0.0
      %306 = vmatpush1.msra.mxu0 %v246
      %307 = vmatprep.subr.mxu0 0.0
      %308 = vmatpush1.msra.mxu0 %v245
      %309 = vmatprep.subr.mxu0 0.0
      %310 = vmatpush1.msra.mxu0 %v244
      %311 = vmatprep.subr.mxu0 0.0
      %312 = vmatpush1.msra.mxu0 %v243
      %313 = vmatprep.subr.mxu0 0.0
      %314 = vmatpush1.msra.mxu0 %v242
      %315 = vmatprep.subr.mxu0 0.0
      %316 = vmatpush1.msra.mxu0 %v241
      %317 = vmatprep.subr.mxu0 0.0
      %318 = vmatpush2.msra.mxu0 0.0
      %319 = vmatprep.subr.mxu0 0.0
      %320 = vmatpush2.msra.mxu0 0.0
      %321 = vmatprep.subr.mxu0 0.0
      %322 = vmatpush2.msra.mxu0 0.0
      %323 = vmatprep.subr.mxu0 0.0
      %324 = vmatpush2.msra.mxu0 0.0
      %325 = vmatprep.subr.mxu0 0.0
      %326 = vmatpush2.msra.mxu0 0.0
      %327 = vmatprep.subr.mxu0 0.0
      %328 = vmatpush2.msra.mxu0 0.0
      %329 = vmatprep.subr.mxu0 0.0
      %330 = vmatpush2.msra.mxu0 0.0
      %331 = vmatprep.subr.mxu0 0.0
      %332 = vmatpush2.msra.mxu0 0.0
      %333 = vmatprep.subr.mxu0 0.0
      %334 = vmatpush2.msra.mxu0 %v264
      %335 = vmatprep.subr.mxu0 0.0
      %336 = vmatpush2.msra.mxu0 %v263
      %337 = vmatprep.subr.mxu0 0.0
      %338 = vmatpush2.msra.mxu0 %v262
      %339 = vmatprep.subr.mxu0 0.0
      %340 = vmatpush2.msra.mxu0 %v261
      %341 = vmatprep.subr.mxu0 0.0
      %342 = vmatpush2.msra.mxu0 %v260
      %343 = vmatprep.subr.mxu0 0.0
      %344 = vmatpush2.msra.mxu0 %v259
      %345 = vmatprep.subr.mxu0 0.0
      %346 = vmatpush2.msra.mxu0 %v258
      %347 = vmatprep.subr.mxu0 0.0
      %348 = vmatpush2.msra.mxu0 %v257
      %349 = vmatprep.mubr.f32.mxu0 %v274
      %350 = vmatmul.mubr.f32.gmra.mxu0 %v233
      %v351 = vpop.f32.mrf.mxu0
      %v352 = vadd.f32 %v270, %v351
      %v353 = vpop.f32.mrf.mxu0
      %354 = vmatprep.mubr.f32.mxu0 %v277
      %355 = vmatmul.mubr.f32.gmra.mxu0 %v235
      %v356 = vpop.f32.mrf.mxu0
      %v357 = vadd.f32 %v270, %v356
      %v358 = vpop.f32.mrf.mxu0
      %359 = vmatprep.mubr.f32.mxu0 %v280
      %360 = vmatmul.mubr.f32.gmra.mxu0 %v237
      %v361 = vpop.f32.mrf.mxu0
      %v362 = vadd.f32 %v270, %v361
      %v363 = vpop.f32.mrf.mxu0
      %364 = vmatprep.mubr.f32.mxu0 %v283
      %365 = vmatmul.mubr.f32.gmra.mxu0 %v239
      %v366 = vpop.f32.mrf.mxu0
      %v367 = vadd.f32 %v270, %v366
      %v368 = vpop.f32.mrf.mxu0
      %369 = vdwg.mxu0
      %v370 = vmax.f32 %v352, 0.0
      %v371 = vmax.f32 %v357, 0.0
      %v372 = vmax.f32 %v362, 0.0
      %v373 = vmax.f32 %v367, 0.0
      %vm378 = vcmask 1040384
      %v379 = vrot.slane %v370, 7
      %v380 = vrot.slane %v371, 7
      %v381 = vsel %vm378, %v379, %v380
      %v382 = vrot.slane %v372, 7
      %v383 = vrot.slane %v373, 7
      %v384 = vsel %vm378, %v382, %v383
      %v391 = vsel %vm378, 0.0, %v379
      %v392 = vsel %vm378, 0.0, %v382
      %v393 = vsel %vm378, %v380, 0.0
      %v394 = vsel %vm378, %v383, 0.0
      %vm399 = vcmask 1046528
      %v400 = vrot.slane %v391, 1
      %v401 = vrot.slane %v381, 1
      %v402 = vsel %vm399, %v400, %v401
      %v403 = vrot.slane %v393, 1
      %v404 = vsel %vm399, %v401, %v403
      %v405 = vrot.slane %v392, 1
      %v406 = vrot.slane %v384, 1
      %v407 = vsel %vm399, %v405, %v406
      %v408 = vrot.slane %v394, 1
      %v409 = vsel %vm399, %v406, %v408
      %vm414 = vcmask 1045504
      %v415 = vrot.slane %v391, 2
      %v416 = vrot.slane %v381, 2
      %v417 = vsel %vm414, %v415, %v416
      %v418 = vrot.slane %v393, 2
      %v419 = vsel %vm414, %v416, %v418
      %v420 = vrot.slane %v392, 2
      %v421 = vrot.slane %v384, 2
      %v422 = vsel %vm414, %v420, %v421
      %v423 = vrot.slane %v394, 2
      %v424 = vsel %vm414, %v421, %v423
      %v429 = vld [vmem:[%s3] sm:$0xff]
      %v430 = vld [vmem:[%s3 + $0x8] sm:$0xff]
      %v431 = vld [vmem:[%s3 + $0x10] sm:$0xff]
      %v432 = vld [vmem:[%s3 + $0x18] sm:$0xff]
      %v433 = vld [vmem:[%s3 + $0x20] sm:$0xff]
      %v434 = vld [vmem:[%s3 + $0x28] sm:$0xff]
      %v435 = vld [vmem:[%s3 + $0x30] sm:$0xff]
      %v436 = vld [vmem:[%s3 + $0x38] sm:$0xff]
      %v437 = vld [vmem:[%s3 + $0x40] sm:$0xff]
      %v438 = vld [vmem:[%s3 + $0x48] sm:$0xff]
      %v439 = vld [vmem:[%s3 + $0x50] sm:$0xff]
      %v440 = vld [vmem:[%s3 + $0x58] sm:$0xff]
      %v441 = vld [vmem:[%s3 + $0x60] sm:$0xff]
      %v442 = vld [vmem:[%s3 + $0x68] sm:$0xff]
      %v443 = vld [vmem:[%s3 + $0x70] sm:$0xff]
      %v444 = vld [vmem:[%s3 + $0x78] sm:$0xff]
      %v445 = vld [vmem:[%s3 + $0x80] sm:$0xff]
      %v446 = vld [vmem:[%s3 + $0x88] sm:$0xff]
      %v447 = vld [vmem:[%s3 + $0x90] sm:$0xff]
      %v448 = vld [vmem:[%s3 + $0x98] sm:$0xff]
      %v449 = vld [vmem:[%s3 + $0xa0] sm:$0xff]
      %v450 = vld [vmem:[%s3 + $0xa8] sm:$0xff]
      %v451 = vld [vmem:[%s3 + $0xb0] sm:$0xff]
      %v452 = vld [vmem:[%s3 + $0xb8] sm:$0xff]
      %v453 = vld [vmem:[%s3 + $0xc0] sm:$0xff]
      %v454 = vld [vmem:[%s3 + $0xc8] sm:$0xff]
      %v455 = vld [vmem:[%s3 + $0xd0] sm:$0xff]
      %v456 = vld [vmem:[%s3 + $0xd8] sm:$0xff]
      %v457 = vld [vmem:[%s3 + $0xe0] sm:$0xff]
      %v458 = vld [vmem:[%s3 + $0xe8] sm:$0xff]
      %v459 = vld [vmem:[%s3 + $0xf0] sm:$0xff]
      %v460 = vld [vmem:[%s3 + $0xf8] sm:$0xff]
      %v461 = vld [vmem:[%s3 + $0x100] sm:$0xff]
      %v462 = vld [vmem:[%s3 + $0x108] sm:$0xff]
      %v463 = vld [vmem:[%s3 + $0x110] sm:$0xff]
      %v464 = vld [vmem:[%s3 + $0x118] sm:$0xff]
      %v465 = vld [vmem:[%s3 + $0x120] sm:$0xff]
      %v466 = vld [vmem:[%s3 + $0x128] sm:$0xff]
      %v467 = vld [vmem:[%s3 + $0x130] sm:$0xff]
      %v468 = vld [vmem:[%s3 + $0x138] sm:$0xff]
      %v469 = vld [vmem:[%s3 + $0x140] sm:$0xff]
      %v470 = vld [vmem:[%s3 + $0x148] sm:$0xff]
      %v471 = vld [vmem:[%s3 + $0x150] sm:$0xff]
      %v472 = vld [vmem:[%s3 + $0x158] sm:$0xff]
      %v473 = vld [vmem:[%s3 + $0x160] sm:$0xff]
      %v474 = vld [vmem:[%s3 + $0x168] sm:$0xff]
      %v475 = vld [vmem:[%s3 + $0x170] sm:$0xff]
      %v476 = vld [vmem:[%s3 + $0x178] sm:$0xff]
      %v477 = vld [vmem:[%s4] sm:$0x1]
      %v479 = vlaneseq
      %v480 = vshrl.u32 %v479, 7
      %v481 = vsub.s32 0, %v480
      %v482 = vrot.slane %v477, %v481
      %484 = vmatprep.subr.mxu0 0.0
      %485 = vmatpush1.msra.mxu0 %v444
      %486 = vmatprep.subr.mxu0 0.0
      %487 = vmatpush1.msra.mxu0 %v443
      %488 = vmatprep.subr.mxu0 0.0
      %489 = vmatpush1.msra.mxu0 %v442
      %490 = vmatprep.subr.mxu0 0.0
      %491 = vmatpush1.msra.mxu0 %v441
      %492 = vmatprep.subr.mxu0 0.0
      %493 = vmatpush1.msra.mxu0 %v440
      %494 = vmatprep.subr.mxu0 0.0
      %495 = vmatpush1.msra.mxu0 %v439
      %496 = vmatprep.subr.mxu0 0.0
      %497 = vmatpush1.msra.mxu0 %v438
      %498 = vmatprep.subr.mxu0 0.0
      %499 = vmatpush1.msra.mxu0 %v437
      %500 = vmatprep.subr.mxu0 0.0
      %501 = vmatpush1.msra.mxu0 %v436
      %502 = vmatprep.subr.mxu0 0.0
      %503 = vmatpush1.msra.mxu0 %v435
      %504 = vmatprep.subr.mxu0 0.0
      %505 = vmatpush1.msra.mxu0 %v434
      %506 = vmatprep.subr.mxu0 0.0
      %507 = vmatpush1.msra.mxu0 %v433
      %508 = vmatprep.subr.mxu0 0.0
      %509 = vmatpush1.msra.mxu0 %v432
      %510 = vmatprep.subr.mxu0 0.0
      %511 = vmatpush1.msra.mxu0 %v431
      %512 = vmatprep.subr.mxu0 0.0
      %513 = vmatpush1.msra.mxu0 %v430
      %514 = vmatprep.subr.mxu0 0.0
      %515 = vmatpush1.msra.mxu0 %v429
      %516 = vmatprep.subr.mxu0 0.0
      %517 = vmatpush2.msra.mxu0 %v460
      %518 = vmatprep.subr.mxu0 0.0
      %519 = vmatpush2.msra.mxu0 %v459
      %520 = vmatprep.subr.mxu0 0.0
      %521 = vmatpush2.msra.mxu0 %v458
      %522 = vmatprep.subr.mxu0 0.0
      %523 = vmatpush2.msra.mxu0 %v457
      %524 = vmatprep.subr.mxu0 0.0
      %525 = vmatpush2.msra.mxu0 %v456
      %526 = vmatprep.subr.mxu0 0.0
      %527 = vmatpush2.msra.mxu0 %v455
      %528 = vmatprep.subr.mxu0 0.0
      %529 = vmatpush2.msra.mxu0 %v454
      %530 = vmatprep.subr.mxu0 0.0
      %531 = vmatpush2.msra.mxu0 %v453
      %532 = vmatprep.subr.mxu0 0.0
      %533 = vmatpush2.msra.mxu0 %v452
      %534 = vmatprep.subr.mxu0 0.0
      %535 = vmatpush2.msra.mxu0 %v451
      %536 = vmatprep.subr.mxu0 0.0
      %537 = vmatpush2.msra.mxu0 %v450
      %538 = vmatprep.subr.mxu0 0.0
      %539 = vmatpush2.msra.mxu0 %v449
      %540 = vmatprep.subr.mxu0 0.0
      %541 = vmatpush2.msra.mxu0 %v448
      %542 = vmatprep.subr.mxu0 0.0
      %543 = vmatpush2.msra.mxu0 %v447
      %544 = vmatprep.subr.mxu0 0.0
      %545 = vmatpush2.msra.mxu0 %v446
      %546 = vmatprep.subr.mxu0 0.0
      %547 = vmatpush2.msra.mxu0 %v445
      %548 = vmatprep.mubr.f32.mxu0 %v402
      %549 = vmatmul.mubr.f32.gmra.mxu0 %v391
      %v550 = vpop.f32.mrf.mxu0
      %v551 = vadd.f32 %v482, %v550
      %v552 = vpop.f32.mrf.mxu0
      %553 = vmatprep.mubr.f32.mxu0 %v404
      %554 = vmatmul.mubr.f32.gmra.mxu0 %v381
      %v555 = vpop.f32.mrf.mxu0
      %v556 = vadd.f32 %v482, %v555
      %v557 = vpop.f32.mrf.mxu0
      %558 = vmatprep.mubr.f32.mxu0 %v407
      %559 = vmatmul.mubr.f32.gmra.mxu0 %v392
      %v560 = vpop.f32.mrf.mxu0
      %v561 = vadd.f32 %v482, %v560
      %v562 = vpop.f32.mrf.mxu0
      %563 = vmatprep.mubr.f32.mxu0 %v409
      %564 = vmatmul.mubr.f32.gmra.mxu0 %v384
      %v565 = vpop.f32.mrf.mxu0
      %v566 = vadd.f32 %v482, %v565
      %v567 = vpop.f32.mrf.mxu0
      %568 = vdwg.mxu0
      %569 = vmatprep.subr.mxu0 0.0
      %570 = vmatpush1.msra.mxu0 %v476
      %571 = vmatprep.subr.mxu0 0.0
      %572 = vmatpush1.msra.mxu0 %v475
      %573 = vmatprep.subr.mxu0 0.0
      %574 = vmatpush1.msra.mxu0 %v474
      %575 = vmatprep.subr.mxu0 0.0
      %576 = vmatpush1.msra.mxu0 %v473
      %577 = vmatprep.subr.mxu0 0.0
      %578 = vmatpush1.msra.mxu0 %v472
      %579 = vmatprep.subr.mxu0 0.0
      %580 = vmatpush1.msra.mxu0 %v471
      %581 = vmatprep.subr.mxu0 0.0
      %582 = vmatpush1.msra.mxu0 %v470
      %583 = vmatprep.subr.mxu0 0.0
      %584 = vmatpush1.msra.mxu0 %v469
      %585 = vmatprep.subr.mxu0 0.0
      %586 = vmatpush1.msra.mxu0 %v468
      %587 = vmatprep.subr.mxu0 0.0
      %588 = vmatpush1.msra.mxu0 %v467
      %589 = vmatprep.subr.mxu0 0.0
      %590 = vmatpush1.msra.mxu0 %v466
      %591 = vmatprep.subr.mxu0 0.0
      %592 = vmatpush1.msra.mxu0 %v465
      %593 = vmatprep.subr.mxu0 0.0
      %594 = vmatpush1.msra.mxu0 %v464
      %595 = vmatprep.subr.mxu0 0.0
      %596 = vmatpush1.msra.mxu0 %v463
      %597 = vmatprep.subr.mxu0 0.0
      %598 = vmatpush1.msra.mxu0 %v462
      %599 = vmatprep.subr.mxu0 0.0
      %600 = vmatpush1.msra.mxu0 %v461
      %601 = vmatprep.subr.mxu0 0.0
      %602 = vmatpush2.msra.mxu0 0.0
      %603 = vmatprep.subr.mxu0 0.0
      %604 = vmatpush2.msra.mxu0 0.0
      %605 = vmatprep.subr.mxu0 0.0
      %606 = vmatpush2.msra.mxu0 0.0
      %607 = vmatprep.subr.mxu0 0.0
      %608 = vmatpush2.msra.mxu0 0.0
      %609 = vmatprep.subr.mxu0 0.0
      %610 = vmatpush2.msra.mxu0 0.0
      %611 = vmatprep.subr.mxu0 0.0
      %612 = vmatpush2.msra.mxu0 0.0
      %613 = vmatprep.subr.mxu0 0.0
      %614 = vmatpush2.msra.mxu0 0.0
      %615 = vmatprep.subr.mxu0 0.0
      %616 = vmatpush2.msra.mxu0 0.0
      %617 = vmatprep.subr.mxu0 0.0
      %618 = vmatpush2.msra.mxu0 0.0
      %619 = vmatprep.subr.mxu0 0.0
      %620 = vmatpush2.msra.mxu0 0.0
      %621 = vmatprep.subr.mxu0 0.0
      %622 = vmatpush2.msra.mxu0 0.0
      %623 = vmatprep.subr.mxu0 0.0
      %624 = vmatpush2.msra.mxu0 0.0
      %625 = vmatprep.subr.mxu0 0.0
      %626 = vmatpush2.msra.mxu0 0.0
      %627 = vmatprep.subr.mxu0 0.0
      %628 = vmatpush2.msra.mxu0 0.0
      %629 = vmatprep.subr.mxu0 0.0
      %630 = vmatpush2.msra.mxu0 0.0
      %631 = vmatprep.subr.mxu0 0.0
      %632 = vmatpush2.msra.mxu0 0.0
      %633 = vmatprep.mubr.f32.mxu0 0.0
      %634 = vmatmul.mubr.f32.gmra.mxu0 %v417
      %v635 = vpop.f32.mrf.mxu0
      %v636 = vadd.f32 %v551, %v635
      %v637 = vpop.f32.mrf.mxu0
      %638 = vmatprep.mubr.f32.mxu0 0.0
      %639 = vmatmul.mubr.f32.gmra.mxu0 %v419
      %v640 = vpop.f32.mrf.mxu0
      %v641 = vadd.f32 %v556, %v640
      %v642 = vpop.f32.mrf.mxu0
      %643 = vmatprep.mubr.f32.mxu0 0.0
      %644 = vmatmul.mubr.f32.gmra.mxu0 %v422
      %v645 = vpop.f32.mrf.mxu0
      %v646 = vadd.f32 %v561, %v645
      %v647 = vpop.f32.mrf.mxu0
      %648 = vmatprep.mubr.f32.mxu0 0.0
      %649 = vmatmul.mubr.f32.gmra.mxu0 %v424
      %v650 = vpop.f32.mrf.mxu0
      %v651 = vadd.f32 %v566, %v650
      %v652 = vpop.f32.mrf.mxu0
      %653 = vdwg.mxu0
      %v654 = vmax.f32 %v636, 0.0
      %v655 = vmax.f32 %v641, 0.0
      %v656 = vmax.f32 %v646, 0.0
      %v657 = vmax.f32 %v651, 0.0
      %658 = vst [vmem:[%s231] sm:$0xff] %v654
      %659 = vst [vmem:[%s231 + $0x8] sm:$0xff] %v655
      %660 = vst [vmem:[%s231 + $0x10] sm:$0xff] %v656
      %661 = vst [vmem:[%s231 + $0x18] sm:$0xff] %v657
      %s662 = smul.u32 2, %s16
      %p663 = scmp.lt.s32.totalorder %s662, 3
      %s664 = scalar_select %p663, %s662, 3
      %s665 = smul.addr %s664, 2
      %s666 = smul.addr %s665, 8
      %s667 = scalar_lea.vmem %s5, %s666
      // Predicated region
      $region41: #{conv_block_forward.1} parent=39 // pred_check
        %p668 = pneg %p144
      $region42: #{conv_block_forward.1} parent=39 // pred_check_branch
        %670 = sbr.rel (%p668) target = $region44
      $region43: #{conv_block_forward.1} parent=39 // pred_region
        %s671 = smul.u32 2, %s16
      $region44: #{conv_block_forward.1} parent=39 // pred_fallthru
        _
    $region40: #{conv_block_forward.1} parent=5 // pred_fallthru
      _
    %p672 = scmp.le.s32.totalorder 2, %s11
    // Predicated region
    $region45: #{conv_block_forward.1} parent=5 // pred_check
      %p673 = pneg %p672
    $region46: #{conv_block_forward.1} parent=5 // pred_check_branch
      %675 = sbr.rel (%p673) target = $region48
    $region47: #{conv_block_forward.1} parent=5 // pred_region
      %s676 = ssub.s32 %s11, 2
      // Predicated region
      $region49: #{conv_block_forward.1} parent=47 // pred_check
        %p677 = pneg %p150
      $region50: #{conv_block_forward.1} parent=47 // pred_check_branch
        %679 = sbr.rel (%p677) target = $region52
      $region51: #{conv_block_forward.1} parent=47 // pred_region
        %s680 = smul.u32 2, %s17
        %p681 = scmp.lt.s32.totalorder %s680, 3
        %s682 = scalar_select %p681, %s680, 3
        %s683 = smul.addr %s682, 2
        %s684 = smul.addr %s683, 8
        %s685 = scalar_lea.vmem %s5, %s684
      $region52: #{conv_block_forward.1} parent=47 // pred_fallthru
        _
    $region48: #{conv_block_forward.1} parent=5 // pred_fallthru
      _
  $region6: #{conv_block_forward.1} parent=0 // loop_footer
    %s15 = sadd.s32 1, %s11
  $region7: #{conv_block_forward.1} parent=0 // loop_footer_branch
    %10 = sbr.rel target = $region3
  $region8: #{conv_block_forward.1} parent=0 // loop_exit
    _

</llo_original>
